<compile_context>
chip_gen: v6e
topology: v6e:2x2x1
jax: 0.10.0
libtpu: 0.0.40
codegen_flags: <defaults>
</compile_context>

<pallas_src>
import jax
import jax.numpy as jnp
from jax.experimental import pallas as pl
from jax.experimental.pallas import tpu as pltpu


def temporal_feature_aggregator(x, w1a, w1b, w3a, w3b, *, parts_per_block=None):
    """x: (p, n, c, s) float32. Weights in PyTorch Conv1d layout, stacked over parts:
       w1a: (p, h, c, 3)  w1b: (p, c, h, 1)  w3a: (p, h, c, 3)  w3b: (p, c, h, 3)."""
    p, n, c, s = x.shape
    h = w1a.shape[1]

    # Default: one grid step (all parts lane-packed).  On v7x with heavy per-step work
    # set parts_per_block = ceil(p/2) to split across the two TensorCores.
    pp = p if parts_per_block is None else max(1, min(parts_per_block, p))
    nb = -(-p // pp)
    p_pad = nb * pp

    if p_pad != p:
        def padp(a):
            return jnp.pad(a, ((0, p_pad - p),) + ((0, 0),) * (a.ndim - 1))
        x, w1a, w1b, w3a, w3b = map(padp, (x, w1a, w1b, w3a, w3b))

    C = pp * c            # lane-packed channel width (parts x channels)
    HH = pp * 2 * h       # lane-packed hidden width (parts x 2 branches x hidden)
    ns = n * s
    eye = jnp.eye(pp, dtype=jnp.float32)

    # ---- x: single transpose to channels-last, parts packed along lanes ------------
    # (p,n,c,s) -> (nb, n, s, pp*c); part j of block b occupies lanes [j*c, (j+1)*c).
    x_pk = jnp.transpose(x, (0, 1, 3, 2)).astype(jnp.float32)              # (p,n,s,c)
    x_pk = x_pk.reshape(nb, pp, n, s, c).transpose(0, 2, 3, 1, 4).reshape(nb, n, s, C)

    # ---- first-conv weights: per-tap block-diagonal (pp*c, pp*2h) ------------------
    # part j: input lanes [j*c,(j+1)*c) -> output cols [j*2h, j*2h+h)=branch3x1 hidden,
    #                                       [j*2h+h,(j+1)*2h)=branch3x3 hidden.
    w1a_t = jnp.transpose(w1a, (3, 0, 2, 1))                               # (3,p,c,h)
    w3a_t = jnp.transpose(w3a, (3, 0, 2, 1))                               # (3,p,c,h)
    wfirst = jnp.concatenate([w1a_t, w3a_t], axis=-1)                      # (3,p,c,2h)
    wfirst = wfirst.reshape(3, nb, pp, c, 2 * h)
    wa = jnp.einsum("kbjio,jl->kbjilo", wfirst, eye)
    wa = wa.reshape(3, nb, C, HH).transpose(1, 0, 2, 3).astype(jnp.float32)  # (nb,3,C,HH)

    # ---- second-conv weights: per-tap (pp*2h, 2*pp*c) ------------------------------
    # output cols [0, C)  = branch3x1 scores (1x1 conv, center tap only, from h1 rows)
    # output cols [C, 2C) = branch3x3 scores (3-tap conv, from h3 rows)
    w1b_t = jnp.transpose(w1b[..., 0], (0, 2, 1))                          # (p,h,c)
    w1b_e = jnp.concatenate(
        [w1b_t, jnp.zeros((p_pad, h, c), jnp.float32)], axis=1)            # (p,2h,c)
    w1b_blk = w1b_e.reshape(nb, pp, 2 * h, c)
    wb_left1 = jnp.einsum("bjio,jl->bjilo", w1b_blk, eye).reshape(nb, HH, C)
    wb_left = jnp.stack(
        [jnp.zeros_like(wb_left1), wb_left1, jnp.zeros_like(wb_left1)], axis=1)

    w3b_t = jnp.transpose(w3b, (0, 3, 2, 1))                               # (p,3,h,c)
    w3b_e = jnp.concatenate(
        [jnp.zeros((p_pad, 3, h, c), jnp.float32), w3b_t], axis=2)         # (p,3,2h,c)
    w3b_blk = w3b_e.reshape(nb, pp, 3, 2 * h, c)
    wb_right = jnp.einsum("bjkio,jl->bkjilo", w3b_blk, eye).reshape(nb, 3, HH, C)

    wb = jnp.concatenate([wb_left, wb_right], axis=-1).astype(jnp.float32)  # (nb,3,HH,2C)

    NEG = -3.0e38  # finite stand-in for -inf (Python float -> no captured jax constant)

    def kernel(x_ref, wa_ref, wb_ref, o_ref):
        x3 = x_ref[0]                                                       # (n, s, C)

        # Temporal shifts of x (per batch, explicit padding rows -> exact boundaries,
        # shared by conv taps, avg pools (zero pad) and max pools (-inf pad)).
        def shifted(d, fill):
            if d == 0:
                return x3
            pad = jnp.full((n, abs(d), C), fill, jnp.float32)
            if d > 0:
                return jnp.concatenate([x3[:, d:, :], pad], axis=1)
            return jnp.concatenate([pad, x3[:, : s + d, :]], axis=1)

        xz = {d: shifted(d, 0.0) for d in (-2, -1, 0, 1, 2)}
        xn = {d: shifted(d, NEG) for d in (-2, -1, 0, 1, 2)}

        # ---- first convs of both branches, all parts: 3 accumulated matmuls --------
        pre = jnp.dot(xz[-1].reshape(ns, C), wa_ref[0, 0],
                      preferred_element_type=jnp.float32)
        pre = pre + jnp.dot(xz[0].reshape(ns, C), wa_ref[0, 1],
                            preferred_element_type=jnp.float32)
        pre = pre + jnp.dot(xz[1].reshape(ns, C), wa_ref[0, 2],
                            preferred_element_type=jnp.float32)
        act = jnp.where(pre > 0, pre, 0.01 * pre)                           # LeakyReLU

        # ---- +-1 temporal shifts of the hidden feature (zero padded per batch) -----
        act3 = act.reshape(n, s, HH)
        zrow = jnp.zeros((n, 1, HH), jnp.float32)
        act_m1 = jnp.concatenate([zrow, act3[:, : s - 1, :]], axis=1).reshape(ns, HH)
        act_p1 = jnp.concatenate([act3[:, 1:, :], zrow], axis=1).reshape(ns, HH)

        # ---- second convs of both branches, all parts: 3 accumulated matmuls -------
        logits = jnp.dot(act_m1, wb_ref[0, 0], preferred_element_type=jnp.float32)
        logits = logits + jnp.dot(act, wb_ref[0, 1], preferred_element_type=jnp.float32)
        logits = logits + jnp.dot(act_p1, wb_ref[0, 2], preferred_element_type=jnp.float32)
        scores = jax.nn.sigmoid(logits)                                     # (ns, 2C)
        s1 = scores[:, :C].reshape(n, s, C)                                 # branch 3x1
        s3 = scores[:, C:].reshape(n, s, C)                                 # branch 3x3

        # ---- pooling (count_include_pad avg, -inf-equivalent max), all parts -------
        avg3 = (xz[-1] + xz[0] + xz[1]) * (1.0 / 3.0)
        max3 = jnp.maximum(jnp.maximum(xn[-1], xn[0]), xn[1])
        avg5 = (xz[-2] + xz[-1] + xz[0] + xz[1] + xz[2]) * 0.2
        max5 = jnp.maximum(jnp.maximum(jnp.maximum(xn[-2], xn[-1]),
                                       jnp.maximum(xn[0], xn[1])), xn[2])

        feat = (avg3 + max3) * s1 + (avg5 + max5) * s3                      # (n, s, C)
        # single lane-dense store (last dim = pp*c)
        o_ref[0] = jnp.max(feat, axis=1).astype(o_ref.dtype)                # (n, C)

    out = pl.pallas_call(
        kernel,
        out_shape=jax.ShapeDtypeStruct((nb, n, C), jnp.float32),
        grid=(nb,),
        in_specs=[
            pl.BlockSpec((1, n, s, C), lambda i: (i, 0, 0, 0)),
            pl.BlockSpec((1, 3, C, HH), lambda i: (i, 0, 0, 0)),
            pl.BlockSpec((1, 3, HH, 2 * C), lambda i: (i, 0, 0, 0)),
        ],
        out_specs=pl.BlockSpec((1, n, C), lambda i: (i, 0, 0)),
        compiler_params=pltpu.CompilerParams(dimension_semantics=("parallel",)),
    )(x_pk, wa, wb)

    # cheap reshape of the tiny output slab back to (p, n, c)
    out = out.reshape(nb, n, pp, c).transpose(0, 2, 1, 3).reshape(p_pad, n, c)
    return out[:p]


def _reference(x, w1a, w1b, w3a, w3b):
    """Pure-JAX reference mirroring the PyTorch forward (for correctness check)."""
    p, n, c, s = x.shape

    def conv1d(inp, w, pad):
        return jax.lax.conv_general_dilated(
            inp, w, window_strides=(1,), padding=[(pad, pad)],
            dimension_numbers=("NCH", "OIH", "NCH"),
            precision=jax.lax.Precision.HIGHEST)

    outs = []
    for i in range(p):
        xi = x[i]
        h1 = conv1d(xi, w1a[i], 1)
        h1 = jnp.where(h1 > 0, h1, 0.01 * h1)
        s1 = jax.nn.sigmoid(conv1d(h1, w1b[i], 0))
        h3 = conv1d(xi, w3a[i], 1)
        h3 = jnp.where(h3 > 0, h3, 0.01 * h3)
        s3 = jax.nn.sigmoid(conv1d(h3, w3b[i], 1))
        xz1 = jnp.pad(xi, ((0, 0), (0, 0), (1, 1)))
        xn1 = jnp.pad(xi, ((0, 0), (0, 0), (1, 1)), constant_values=-jnp.inf)
        avg3 = (xz1[:, :, 0:s] + xz1[:, :, 1:s + 1] + xz1[:, :, 2:s + 2]) / 3.0
        max3 = jnp.maximum(jnp.maximum(xn1[:, :, 0:s], xn1[:, :, 1:s + 1]),
                           xn1[:, :, 2:s + 2])
        xz2 = jnp.pad(xi, ((0, 0), (0, 0), (2, 2)))
        xn2 = jnp.pad(xi, ((0, 0), (0, 0), (2, 2)), constant_values=-jnp.inf)
        avg5 = sum(xz2[:, :, k:k + s] for k in range(5)) / 5.0
        max5 = xn2[:, :, 0:s]
        for k in range(1, 5):
            max5 = jnp.maximum(max5, xn2[:, :, k:k + s])
        f1 = (avg3 + max3) * s1
        f3 = (avg5 + max5) * s3
        outs.append(jnp.max(f1 + f3, axis=-1))
    return jnp.stack(outs, 0)


if __name__ == "__main__":
    part_num, batch, in_channels, seq = 4, 2, 32, 8
    squeeze = 4
    hidden = in_channels // squeeze

    key = jax.random.PRNGKey(0)
    kx, k1, k2, k3, k4 = jax.random.split(key, 5)
    x = jax.random.normal(kx, (part_num, batch, in_channels, seq), jnp.float32)
    # deterministic synthetic Conv1d weights (PyTorch layout: (out, in, k)), per part
    w1a = jax.random.normal(k1, (part_num, hidden, in_channels, 3), jnp.float32) * 0.15
    w1b = jax.random.normal(k2, (part_num, in_channels, hidden, 1), jnp.float32) * 0.30
    w3a = jax.random.normal(k3, (part_num, hidden, in_channels, 3), jnp.float32) * 0.15
    w3b = jax.random.normal(k4, (part_num, in_channels, hidden, 3), jnp.float32) * 0.20

    out = jax.block_until_ready(temporal_feature_aggregator(x, w1a, w1b, w3a, w3b))
    ref = jax.block_until_ready(_reference(x, w1a, w1b, w3a, w3b))

    assert out.shape == (part_num, batch, in_channels)
    if not bool(jnp.allclose(out, ref, atol=1e-3, rtol=1e-3)):
        raise AssertionError("Pallas kernel output does not match reference")
    print("KERNEL_OK")
</pallas_src>

<mosaic_0001>
module attributes {stable_mosaic.version = 11 : i64} {
  func.func @kernel(%arg0: i32, %arg1: memref<1x2x8x128xf32, #tpu.memory_space<vmem>>, %arg2: memref<1x3x128x64xf32, #tpu.memory_space<vmem>>, %arg3: memref<1x3x64x256xf32, #tpu.memory_space<vmem>>, %arg4: memref<1x2x128xf32, #tpu.memory_space<vmem>>) attributes {dimension_semantics = [#tpu.dimension_semantics<parallel>], iteration_bounds = array<i64: 1>, scalar_prefetch = 0 : i64, scratch_operands = 0 : i64, tpu.core_type = #tpu.core_type<tc>, window_params = [{transform_indices = @transform_0, window_bounds = array<i64: 1, 2, 8, 128>}, {transform_indices = @transform_1, window_bounds = array<i64: 1, 3, 128, 64>}, {transform_indices = @transform_2, window_bounds = array<i64: 1, 3, 64, 256>}, {transform_indices = @transform_3, window_bounds = array<i64: 1, 2, 128>}]} {
    %c0 = arith.constant 0 : index
    %c0_0 = arith.constant 0 : index
    %c0_1 = arith.constant 0 : index
    %c0_2 = arith.constant 0 : index
    %0 = vector.load %arg1[%c0, %c0_0, %c0_1, %c0_2] : memref<1x2x8x128xf32, #tpu.memory_space<vmem>>, vector<1x2x8x128xf32>
    %1 = vector.shape_cast %0 : vector<1x2x8x128xf32> to vector<2x8x128xf32>
    %cst = arith.constant 0.000000e+00 : f32
    %2 = vector.broadcast %cst : f32 to vector<2x2x128xf32>
    %3 = vector.extract_strided_slice %1 {offsets = [0, 0, 0], sizes = [2, 6, 128], strides = [1, 1, 1]} : vector<2x8x128xf32> to vector<2x6x128xf32>
    %4 = tpu.concatenate %2, %3 in 1 : vector<2x2x128xf32>, vector<2x6x128xf32> -> vector<2x8x128xf32>
    %cst_3 = arith.constant 0.000000e+00 : f32
    %5 = vector.broadcast %cst_3 : f32 to vector<2x1x128xf32>
    %6 = vector.extract_strided_slice %1 {offsets = [0, 0, 0], sizes = [2, 7, 128], strides = [1, 1, 1]} : vector<2x8x128xf32> to vector<2x7x128xf32>
    %7 = tpu.concatenate %5, %6 in 1 : vector<2x1x128xf32>, vector<2x7x128xf32> -> vector<2x8x128xf32>
    %cst_4 = arith.constant 0.000000e+00 : f32
    %8 = vector.broadcast %cst_4 : f32 to vector<2x1x128xf32>
    %9 = vector.extract_strided_slice %1 {offsets = [0, 1, 0], sizes = [2, 7, 128], strides = [1, 1, 1]} : vector<2x8x128xf32> to vector<2x7x128xf32>
    %10 = tpu.concatenate %9, %8 in 1 : vector<2x7x128xf32>, vector<2x1x128xf32> -> vector<2x8x128xf32>
    %cst_5 = arith.constant 0.000000e+00 : f32
    %11 = vector.broadcast %cst_5 : f32 to vector<2x2x128xf32>
    %12 = vector.extract_strided_slice %1 {offsets = [0, 2, 0], sizes = [2, 6, 128], strides = [1, 1, 1]} : vector<2x8x128xf32> to vector<2x6x128xf32>
    %13 = tpu.concatenate %12, %11 in 1 : vector<2x6x128xf32>, vector<2x2x128xf32> -> vector<2x8x128xf32>
    %cst_6 = arith.constant -3.000000e+38 : f32
    %14 = vector.broadcast %cst_6 : f32 to vector<2x2x128xf32>
    %15 = vector.extract_strided_slice %1 {offsets = [0, 0, 0], sizes = [2, 6, 128], strides = [1, 1, 1]} : vector<2x8x128xf32> to vector<2x6x128xf32>
    %16 = tpu.concatenate %14, %15 in 1 : vector<2x2x128xf32>, vector<2x6x128xf32> -> vector<2x8x128xf32>
    %cst_7 = arith.constant -3.000000e+38 : f32
    %17 = vector.broadcast %cst_7 : f32 to vector<2x1x128xf32>
    %18 = vector.extract_strided_slice %1 {offsets = [0, 0, 0], sizes = [2, 7, 128], strides = [1, 1, 1]} : vector<2x8x128xf32> to vector<2x7x128xf32>
    %19 = tpu.concatenate %17, %18 in 1 : vector<2x1x128xf32>, vector<2x7x128xf32> -> vector<2x8x128xf32>
    %cst_8 = arith.constant -3.000000e+38 : f32
    %20 = vector.broadcast %cst_8 : f32 to vector<2x1x128xf32>
    %21 = vector.extract_strided_slice %1 {offsets = [0, 1, 0], sizes = [2, 7, 128], strides = [1, 1, 1]} : vector<2x8x128xf32> to vector<2x7x128xf32>
    %22 = tpu.concatenate %21, %20 in 1 : vector<2x7x128xf32>, vector<2x1x128xf32> -> vector<2x8x128xf32>
    %cst_9 = arith.constant -3.000000e+38 : f32
    %23 = vector.broadcast %cst_9 : f32 to vector<2x2x128xf32>
    %24 = vector.extract_strided_slice %1 {offsets = [0, 2, 0], sizes = [2, 6, 128], strides = [1, 1, 1]} : vector<2x8x128xf32> to vector<2x6x128xf32>
    %25 = tpu.concatenate %24, %23 in 1 : vector<2x6x128xf32>, vector<2x2x128xf32> -> vector<2x8x128xf32>
    %26 = vector.shape_cast %7 : vector<2x8x128xf32> to vector<16x128xf32>
    %c0_10 = arith.constant 0 : index
    %c0_11 = arith.constant 0 : index
    %c0_12 = arith.constant 0 : index
    %c0_13 = arith.constant 0 : index
    %27 = vector.load %arg2[%c0_10, %c0_11, %c0_12, %c0_13] : memref<1x3x128x64xf32, #tpu.memory_space<vmem>>, vector<1x1x128x64xf32>
    %28 = vector.shape_cast %27 : vector<1x1x128x64xf32> to vector<128x64xf32>
    %cst_14 = arith.constant dense<0.000000e+00> : vector<16x64xf32>
    %29 = tpu.matmul %26, %28, %cst_14 {dimension_numbers = #tpu.dot_dimension_numbers<[1], [0], [0], [1], [0, 0, 1, 1], [], []>} : vector<16x128xf32>, vector<128x64xf32>, vector<16x64xf32> -> vector<16x64xf32>
    %30 = vector.shape_cast %1 : vector<2x8x128xf32> to vector<16x128xf32>
    %c0_15 = arith.constant 0 : index
    %c1 = arith.constant 1 : index
    %c0_16 = arith.constant 0 : index
    %c0_17 = arith.constant 0 : index
    %31 = vector.load %arg2[%c0_15, %c1, %c0_16, %c0_17] : memref<1x3x128x64xf32, #tpu.memory_space<vmem>>, vector<1x1x128x64xf32>
    %32 = vector.shape_cast %31 : vector<1x1x128x64xf32> to vector<128x64xf32>
    %cst_18 = arith.constant dense<0.000000e+00> : vector<16x64xf32>
    %33 = tpu.matmul %30, %32, %cst_18 {dimension_numbers = #tpu.dot_dimension_numbers<[1], [0], [0], [1], [0, 0, 1, 1], [], []>} : vector<16x128xf32>, vector<128x64xf32>, vector<16x64xf32> -> vector<16x64xf32>
    %34 = arith.addf %29, %33 : vector<16x64xf32>
    %35 = vector.shape_cast %10 : vector<2x8x128xf32> to vector<16x128xf32>
    %c0_19 = arith.constant 0 : index
    %c2 = arith.constant 2 : index
    %c0_20 = arith.constant 0 : index
    %c0_21 = arith.constant 0 : index
    %36 = vector.load %arg2[%c0_19, %c2, %c0_20, %c0_21] : memref<1x3x128x64xf32, #tpu.memory_space<vmem>>, vector<1x1x128x64xf32>
    %37 = vector.shape_cast %36 : vector<1x1x128x64xf32> to vector<128x64xf32>
    %cst_22 = arith.constant dense<0.000000e+00> : vector<16x64xf32>
    %38 = tpu.matmul %35, %37, %cst_22 {dimension_numbers = #tpu.dot_dimension_numbers<[1], [0], [0], [1], [0, 0, 1, 1], [], []>} : vector<16x128xf32>, vector<128x64xf32>, vector<16x64xf32> -> vector<16x64xf32>
    %39 = arith.addf %34, %38 : vector<16x64xf32>
    %cst_23 = arith.constant 0.000000e+00 : f32
    %40 = vector.broadcast %cst_23 : f32 to vector<16x64xf32>
    %41 = arith.cmpf ogt, %39, %40 : vector<16x64xf32>
    %cst_24 = arith.constant 0.00999999977 : f32
    %42 = vector.broadcast %cst_24 : f32 to vector<16x64xf32>
    %43 = arith.mulf %42, %39 : vector<16x64xf32>
    %44 = arith.select %41, %39, %43 : vector<16x64xi1>, vector<16x64xf32>
    %45 = vector.shape_cast %44 : vector<16x64xf32> to vector<2x8x64xf32>
    %cst_25 = arith.constant 0.000000e+00 : f32
    %46 = vector.broadcast %cst_25 : f32 to vector<2x1x64xf32>
    %47 = vector.extract_strided_slice %45 {offsets = [0, 0, 0], sizes = [2, 7, 64], strides = [1, 1, 1]} : vector<2x8x64xf32> to vector<2x7x64xf32>
    %48 = tpu.concatenate %46, %47 in 1 : vector<2x1x64xf32>, vector<2x7x64xf32> -> vector<2x8x64xf32>
    %49 = vector.shape_cast %48 : vector<2x8x64xf32> to vector<16x64xf32>
    %50 = vector.extract_strided_slice %45 {offsets = [0, 1, 0], sizes = [2, 7, 64], strides = [1, 1, 1]} : vector<2x8x64xf32> to vector<2x7x64xf32>
    %51 = tpu.concatenate %50, %46 in 1 : vector<2x7x64xf32>, vector<2x1x64xf32> -> vector<2x8x64xf32>
    %52 = vector.shape_cast %51 : vector<2x8x64xf32> to vector<16x64xf32>
    %c0_26 = arith.constant 0 : index
    %c0_27 = arith.constant 0 : index
    %c0_28 = arith.constant 0 : index
    %c0_29 = arith.constant 0 : index
    %53 = vector.load %arg3[%c0_26, %c0_27, %c0_28, %c0_29] : memref<1x3x64x256xf32, #tpu.memory_space<vmem>>, vector<1x1x64x256xf32>
    %54 = vector.shape_cast %53 : vector<1x1x64x256xf32> to vector<64x256xf32>
    %cst_30 = arith.constant dense<0.000000e+00> : vector<16x256xf32>
    %55 = tpu.matmul %49, %54, %cst_30 {dimension_numbers = #tpu.dot_dimension_numbers<[1], [0], [0], [1], [0, 0, 1, 1], [], []>} : vector<16x64xf32>, vector<64x256xf32>, vector<16x256xf32> -> vector<16x256xf32>
    %c0_31 = arith.constant 0 : index
    %c1_32 = arith.constant 1 : index
    %c0_33 = arith.constant 0 : index
    %c0_34 = arith.constant 0 : index
    %56 = vector.load %arg3[%c0_31, %c1_32, %c0_33, %c0_34] : memref<1x3x64x256xf32, #tpu.memory_space<vmem>>, vector<1x1x64x256xf32>
    %57 = vector.shape_cast %56 : vector<1x1x64x256xf32> to vector<64x256xf32>
    %cst_35 = arith.constant dense<0.000000e+00> : vector<16x256xf32>
    %58 = tpu.matmul %44, %57, %cst_35 {dimension_numbers = #tpu.dot_dimension_numbers<[1], [0], [0], [1], [0, 0, 1, 1], [], []>} : vector<16x64xf32>, vector<64x256xf32>, vector<16x256xf32> -> vector<16x256xf32>
    %59 = arith.addf %55, %58 : vector<16x256xf32>
    %c0_36 = arith.constant 0 : index
    %c2_37 = arith.constant 2 : index
    %c0_38 = arith.constant 0 : index
    %c0_39 = arith.constant 0 : index
    %60 = vector.load %arg3[%c0_36, %c2_37, %c0_38, %c0_39] : memref<1x3x64x256xf32, #tpu.memory_space<vmem>>, vector<1x1x64x256xf32>
    %61 = vector.shape_cast %60 : vector<1x1x64x256xf32> to vector<64x256xf32>
    %cst_40 = arith.constant dense<0.000000e+00> : vector<16x256xf32>
    %62 = tpu.matmul %52, %61, %cst_40 {dimension_numbers = #tpu.dot_dimension_numbers<[1], [0], [0], [1], [0, 0, 1, 1], [], []>} : vector<16x64xf32>, vector<64x256xf32>, vector<16x256xf32> -> vector<16x256xf32>
    %63 = arith.addf %59, %62 : vector<16x256xf32>
    %64 = arith.negf %63 : vector<16x256xf32>
    %65 = math.exp %64 : vector<16x256xf32>
    %cst_41 = arith.constant 1.000000e+00 : f32
    %66 = vector.broadcast %cst_41 : f32 to vector<16x256xf32>
    %67 = arith.addf %66, %65 : vector<16x256xf32>
    %68 = arith.divf %66, %67 : vector<16x256xf32>
    %69 = vector.extract_strided_slice %68 {offsets = [0, 0], sizes = [16, 128], strides = [1, 1]} : vector<16x256xf32> to vector<16x128xf32>
    %70 = vector.shape_cast %69 : vector<16x128xf32> to vector<2x8x128xf32>
    %71 = vector.extract_strided_slice %68 {offsets = [0, 128], sizes = [16, 128], strides = [1, 1]} : vector<16x256xf32> to vector<16x128xf32>
    %72 = vector.shape_cast %71 : vector<16x128xf32> to vector<2x8x128xf32>
    %73 = arith.addf %7, %1 : vector<2x8x128xf32>
    %74 = arith.addf %73, %10 : vector<2x8x128xf32>
    %cst_42 = arith.constant 0.333333343 : f32
    %75 = vector.broadcast %cst_42 : f32 to vector<2x8x128xf32>
    %76 = arith.mulf %74, %75 : vector<2x8x128xf32>
    %77 = arith.maximumf %19, %1 : vector<2x8x128xf32>
    %78 = arith.maximumf %77, %22 : vector<2x8x128xf32>
    %79 = arith.addf %4, %7 : vector<2x8x128xf32>
    %80 = arith.addf %79, %1 : vector<2x8x128xf32>
    %81 = arith.addf %80, %10 : vector<2x8x128xf32>
    %82 = arith.addf %81, %13 : vector<2x8x128xf32>
    %cst_43 = arith.constant 2.000000e-01 : f32
    %83 = vector.broadcast %cst_43 : f32 to vector<2x8x128xf32>
    %84 = arith.mulf %82, %83 : vector<2x8x128xf32>
    %85 = arith.maximumf %16, %19 : vector<2x8x128xf32>
    %86 = arith.maximumf %1, %22 : vector<2x8x128xf32>
    %87 = arith.maximumf %85, %86 : vector<2x8x128xf32>
    %88 = arith.maximumf %87, %25 : vector<2x8x128xf32>
    %89 = arith.addf %76, %78 : vector<2x8x128xf32>
    %90 = arith.mulf %89, %70 : vector<2x8x128xf32>
    %91 = arith.addf %84, %88 : vector<2x8x128xf32>
    %92 = arith.mulf %91, %72 : vector<2x8x128xf32>
    %93 = arith.addf %90, %92 : vector<2x8x128xf32>
    %cst_44 = arith.constant dense<0xFF800000> : vector<2x128xf32>
    %94 = vector.multi_reduction <maximumf>, %93, %cst_44 [1] : vector<2x8x128xf32> to vector<2x128xf32>
    %c0_45 = arith.constant 0 : index
    %c0_46 = arith.constant 0 : index
    %c0_47 = arith.constant 0 : index
    %95 = vector.load %arg4[%c0_45, %c0_46, %c0_47] : memref<1x2x128xf32, #tpu.memory_space<vmem>>, vector<1x2x128xf32>
    %96 = vector.shape_cast %95 : vector<1x2x128xf32> to vector<2x128xf32>
    %97 = vector.shape_cast %94 : vector<2x128xf32> to vector<1x2x128xf32>
    tpu.vector_store %arg4[%c0_45, %c0_46, %c0_47], %97 {strides = array<i32>} : memref<1x2x128xf32, #tpu.memory_space<vmem>>, vector<1x2x128xf32>,
    return
  }
  func.func @transform_0(%arg0: i32) -> (i32, i32, i32, i32) {
    %c0_i32 = arith.constant 0 : i32
    %c0_i32_0 = arith.constant 0 : i32
    %c0_i32_1 = arith.constant 0 : i32
    %c0_i32_2 = arith.constant 0 : i32
    return %arg0, %c0_i32, %c0_i32_0, %c0_i32_1 : i32, i32, i32, i32
  }
  func.func @transform_1(%arg0: i32) -> (i32, i32, i32, i32) {
    %c0_i32 = arith.constant 0 : i32
    %c0_i32_0 = arith.constant 0 : i32
    %c0_i32_1 = arith.constant 0 : i32
    %c0_i32_2 = arith.constant 0 : i32
    return %arg0, %c0_i32, %c0_i32_0, %c0_i32_1 : i32, i32, i32, i32
  }
  func.func @transform_2(%arg0: i32) -> (i32, i32, i32, i32) {
    %c0_i32 = arith.constant 0 : i32
    %c0_i32_0 = arith.constant 0 : i32
    %c0_i32_1 = arith.constant 0 : i32
    %c0_i32_2 = arith.constant 0 : i32
    return %arg0, %c0_i32, %c0_i32_0, %c0_i32_1 : i32, i32, i32, i32
  }
  func.func @transform_3(%arg0: i32) -> (i32, i32, i32) {
    %c0_i32 = arith.constant 0 : i32
    %c0_i32_0 = arith.constant 0 : i32
    %c0_i32_1 = arith.constant 0 : i32
    return %arg0, %c0_i32, %c0_i32_0 : i32, i32, i32
  }
}

</mosaic_0001>

<llo_original>
// kernel: tpu_custom_call.1
$region0: #{tpu_custom_call.1}
  #allocation0 [shape = 'u32[]', space=smem, size = 0x4, offset = 0x4, fixed_abs, tag = 'smem constant byte address 0x4 - core index']
  #allocation1 [shape = 'u32[144,128]{1,0:T(1,128)}', space=vmem, size = 0x12000, scoped, tag = 'internal scratch']
  %s0 = inlined_call_operand.vmem [shape: f32[1,2,8,128], index: 0, kind: input, shape index: {}]
  %s1 = inlined_call_operand.vmem [shape: f32[1,3,128,64], index: 1, kind: input, shape index: {}]
  %s2 = inlined_call_operand.vmem [shape: f32[1,3,64,256], index: 2, kind: input, shape index: {}]
  %s3 = inlined_call_operand.hbm [shape: f32[1,2,128], index: 3, kind: output, shape index: {}]
  %s4 = sld [smem:[#allocation0]]
  $region22: #{tpu_custom_call.1} parent=0
    _
  %s6 = ssub.s32 1, %s4
  %s7 = scalar_select 0, %s6, %s4
  $region1: #{tpu_custom_call.1} parent=0
    #allocation2 [shape = 'u8[1024]{0}', space=vmem, size = 0x400, scoped, tag = 'output window, operand 0, single buffered']
    #allocation3 [shape = 's32[1]{0}', space=sflag, size = 0x4, scoped, tag = 'scoped memory for tpu_custom_call.1']
    %8 = vsyncpa [#allocation3], 0
    // Predicated region
    $region2: #{tpu_custom_call.1} parent=1 // pred_check
      _
    $region3: #{tpu_custom_call.1} parent=1 // pred_check_branch
      %10 = sbr.rel (0) target = $region5
    $region4: #{tpu_custom_call.1} parent=1 // pred_region
      _
    $region5: #{tpu_custom_call.1} parent=1 // pred_fallthru
      _
    // Predicated region
    $region6: #{tpu_custom_call.1} parent=1 // pred_check
      _
    $region7: #{tpu_custom_call.1} parent=1 // pred_check_branch
      %12 = sbr.rel (0) target = $region9
    $region8: #{tpu_custom_call.1} parent=1 // pred_region
      _
    $region9: #{tpu_custom_call.1} parent=1 // pred_fallthru
      _
    // Predicated region
    $region10: #{tpu_custom_call.1} parent=1 // pred_check
      _
    $region11: #{tpu_custom_call.1} parent=1 // pred_check_branch
      %14 = sbr.rel (0) target = $region13
    $region12: #{tpu_custom_call.1} parent=1 // pred_region
      _
    $region13: #{tpu_custom_call.1} parent=1 // pred_fallthru
      _
    %v15 = vld [vmem:[%s0] sm:$0xff]
    %v16 = vld [vmem:[%s0 + $0x8] sm:$0xff]
    %v19 = vrot.slane %v15, 6
    %v20 = vrot.slane %v16, 6
    %vm23 = vcmask 1041408
    %v24 = vsel %vm23, 0.0, %v19
    %v25 = vsel %vm23, 0.0, %v20
    %v26 = vrot.slane %v15, 7
    %v27 = vrot.slane %v16, 7
    %vm30 = vcmask 1040384
    %v31 = vsel %vm30, 0.0, %v26
    %v32 = vsel %vm30, 0.0, %v27
    %v33 = vrot.slane %v15, 1
    %v34 = vrot.slane %v16, 1
    %vm37 = vcmask 1046528
    %v38 = vsel %vm37, %v33, 0.0
    %v39 = vsel %vm37, %v34, 0.0
    %v40 = vrot.slane %v15, 2
    %v41 = vrot.slane %v16, 2
    %vm44 = vcmask 1045504
    %v45 = vsel %vm44, %v40, 0.0
    %v46 = vsel %vm44, %v41, 0.0
    %v47 = vsel %vm23, -3e+38, %v19
    %v48 = vsel %vm23, -3e+38, %v20
    %v49 = vsel %vm30, -3e+38, %v26
    %v50 = vsel %vm30, -3e+38, %v27
    %v51 = vsel %vm37, %v33, -3e+38
    %v52 = vsel %vm37, %v34, -3e+38
    %v53 = vsel %vm44, %v40, -3e+38
    %v54 = vsel %vm44, %v41, -3e+38
    %v55 = vld [vmem:[%s1] sm:$0xff]
    %v56 = vld [vmem:[%s1 + $0x8] sm:$0xff]
    %v57 = vld [vmem:[%s1 + $0x10] sm:$0xff]
    %v58 = vld [vmem:[%s1 + $0x18] sm:$0xff]
    %v59 = vld [vmem:[%s1 + $0x20] sm:$0xff]
    %v60 = vld [vmem:[%s1 + $0x28] sm:$0xff]
    %v61 = vld [vmem:[%s1 + $0x30] sm:$0xff]
    %v62 = vld [vmem:[%s1 + $0x38] sm:$0xff]
    %v63 = vld [vmem:[%s1 + $0x40] sm:$0xff]
    %v64 = vld [vmem:[%s1 + $0x48] sm:$0xff]
    %v65 = vld [vmem:[%s1 + $0x50] sm:$0xff]
    %v66 = vld [vmem:[%s1 + $0x58] sm:$0xff]
    %v67 = vld [vmem:[%s1 + $0x60] sm:$0xff]
    %v68 = vld [vmem:[%s1 + $0x68] sm:$0xff]
    %v69 = vld [vmem:[%s1 + $0x70] sm:$0xff]
    %v70 = vld [vmem:[%s1 + $0x78] sm:$0xff]
    %s71 = scalar_lea.vmem %s1, 128
    %v72 = vld [vmem:[%s71] sm:$0xff]
    %v73 = vld [vmem:[%s71 + $0x8] sm:$0xff]
    %v74 = vld [vmem:[%s71 + $0x10] sm:$0xff]
    %v75 = vld [vmem:[%s71 + $0x18] sm:$0xff]
    %v76 = vld [vmem:[%s71 + $0x20] sm:$0xff]
    %v77 = vld [vmem:[%s71 + $0x28] sm:$0xff]
    %v78 = vld [vmem:[%s71 + $0x30] sm:$0xff]
    %v79 = vld [vmem:[%s71 + $0x38] sm:$0xff]
    %v80 = vld [vmem:[%s71 + $0x40] sm:$0xff]
    %v81 = vld [vmem:[%s71 + $0x48] sm:$0xff]
    %v82 = vld [vmem:[%s71 + $0x50] sm:$0xff]
    %v83 = vld [vmem:[%s71 + $0x58] sm:$0xff]
    %v84 = vld [vmem:[%s71 + $0x60] sm:$0xff]
    %v85 = vld [vmem:[%s71 + $0x68] sm:$0xff]
    %v86 = vld [vmem:[%s71 + $0x70] sm:$0xff]
    %v87 = vld [vmem:[%s71 + $0x78] sm:$0xff]
    %88 = vmatprep.subr.mxu0 0.0
    %89 = vmatpush1.msra.mxu0 %v87
    %90 = vmatprep.subr.mxu0 0.0
    %91 = vmatpush1.msra.mxu0 %v86
    %92 = vmatprep.subr.mxu0 0.0
    %93 = vmatpush1.msra.mxu0 %v85
    %94 = vmatprep.subr.mxu0 0.0
    %95 = vmatpush1.msra.mxu0 %v84
    %96 = vmatprep.subr.mxu0 0.0
    %97 = vmatpush1.msra.mxu0 %v83
    %98 = vmatprep.subr.mxu0 0.0
    %99 = vmatpush1.msra.mxu0 %v82
    %100 = vmatprep.subr.mxu0 0.0
    %101 = vmatpush1.msra.mxu0 %v81
    %102 = vmatprep.subr.mxu0 0.0
    %103 = vmatpush1.msra.mxu0 %v80
    %104 = vmatprep.subr.mxu0 0.0
    %105 = vmatpush1.msra.mxu0 %v79
    %106 = vmatprep.subr.mxu0 0.0
    %107 = vmatpush1.msra.mxu0 %v78
    %108 = vmatprep.subr.mxu0 0.0
    %109 = vmatpush1.msra.mxu0 %v77
    %110 = vmatprep.subr.mxu0 0.0
    %111 = vmatpush1.msra.mxu0 %v76
    %112 = vmatprep.subr.mxu0 0.0
    %113 = vmatpush1.msra.mxu0 %v75
    %114 = vmatprep.subr.mxu0 0.0
    %115 = vmatpush1.msra.mxu0 %v74
    %116 = vmatprep.subr.mxu0 0.0
    %117 = vmatpush1.msra.mxu0 %v73
    %118 = vmatprep.subr.mxu0 0.0
    %119 = vmatpush1.msra.mxu0 %v72
    %120 = vmatprep.subr.mxu0 0.0
    %121 = vmatpush2.msra.mxu0 0.0
    %122 = vmatprep.subr.mxu0 0.0
    %123 = vmatpush2.msra.mxu0 0.0
    %124 = vmatprep.subr.mxu0 0.0
    %125 = vmatpush2.msra.mxu0 0.0
    %126 = vmatprep.subr.mxu0 0.0
    %127 = vmatpush2.msra.mxu0 0.0
    %128 = vmatprep.subr.mxu0 0.0
    %129 = vmatpush2.msra.mxu0 0.0
    %130 = vmatprep.subr.mxu0 0.0
    %131 = vmatpush2.msra.mxu0 0.0
    %132 = vmatprep.subr.mxu0 0.0
    %133 = vmatpush2.msra.mxu0 0.0
    %134 = vmatprep.subr.mxu0 0.0
    %135 = vmatpush2.msra.mxu0 0.0
    %136 = vmatprep.subr.mxu0 0.0
    %137 = vmatpush2.msra.mxu0 0.0
    %138 = vmatprep.subr.mxu0 0.0
    %139 = vmatpush2.msra.mxu0 0.0
    %140 = vmatprep.subr.mxu0 0.0
    %141 = vmatpush2.msra.mxu0 0.0
    %142 = vmatprep.subr.mxu0 0.0
    %143 = vmatpush2.msra.mxu0 0.0
    %144 = vmatprep.subr.mxu0 0.0
    %145 = vmatpush2.msra.mxu0 0.0
    %146 = vmatprep.subr.mxu0 0.0
    %147 = vmatpush2.msra.mxu0 0.0
    %148 = vmatprep.subr.mxu0 0.0
    %149 = vmatpush2.msra.mxu0 0.0
    %150 = vmatprep.subr.mxu0 0.0
    %151 = vmatpush2.msra.mxu0 0.0
    %152 = vmatprep.mubr.f32.mxu0 0.0
    %153 = vmatmul.mubr.f32.gmra.mxu0 %v15
    %v154 = vpop.f32.mrf.mxu0
    %v155 = vadd.f32 0.0, %v154
    %v156 = vpop.f32.mrf.mxu0
    %157 = vmatprep.mubr.f32.mxu0 0.0
    %158 = vmatmul.mubr.f32.gmra.mxu0 %v16
    %v159 = vpop.f32.mrf.mxu0
    %v160 = vadd.f32 0.0, %v159
    %v161 = vpop.f32.mrf.mxu0
    %162 = vdwg.mxu0
    %163 = vmatprep.subr.mxu0 0.0
    %164 = vmatpush1.msra.mxu0 %v70
    %165 = vmatprep.subr.mxu0 0.0
    %166 = vmatpush1.msra.mxu0 %v69
    %167 = vmatprep.subr.mxu0 0.0
    %168 = vmatpush1.msra.mxu0 %v68
    %169 = vmatprep.subr.mxu0 0.0
    %170 = vmatpush1.msra.mxu0 %v67
    %171 = vmatprep.subr.mxu0 0.0
    %172 = vmatpush1.msra.mxu0 %v66
    %173 = vmatprep.subr.mxu0 0.0
    %174 = vmatpush1.msra.mxu0 %v65
    %175 = vmatprep.subr.mxu0 0.0
    %176 = vmatpush1.msra.mxu0 %v64
    %177 = vmatprep.subr.mxu0 0.0
    %178 = vmatpush1.msra.mxu0 %v63
    %179 = vmatprep.subr.mxu0 0.0
    %180 = vmatpush1.msra.mxu0 %v62
    %181 = vmatprep.subr.mxu0 0.0
    %182 = vmatpush1.msra.mxu0 %v61
    %183 = vmatprep.subr.mxu0 0.0
    %184 = vmatpush1.msra.mxu0 %v60
    %185 = vmatprep.subr.mxu0 0.0
    %186 = vmatpush1.msra.mxu0 %v59
    %187 = vmatprep.subr.mxu0 0.0
    %188 = vmatpush1.msra.mxu0 %v58
    %189 = vmatprep.subr.mxu0 0.0
    %190 = vmatpush1.msra.mxu0 %v57
    %191 = vmatprep.subr.mxu0 0.0
    %192 = vmatpush1.msra.mxu0 %v56
    %193 = vmatprep.subr.mxu0 0.0
    %194 = vmatpush1.msra.mxu0 %v55
    %195 = vmatprep.subr.mxu0 0.0
    %196 = vmatpush2.msra.mxu0 0.0
    %197 = vmatprep.subr.mxu0 0.0
    %198 = vmatpush2.msra.mxu0 0.0
    %199 = vmatprep.subr.mxu0 0.0
    %200 = vmatpush2.msra.mxu0 0.0
    %201 = vmatprep.subr.mxu0 0.0
    %202 = vmatpush2.msra.mxu0 0.0
    %203 = vmatprep.subr.mxu0 0.0
    %204 = vmatpush2.msra.mxu0 0.0
    %205 = vmatprep.subr.mxu0 0.0
    %206 = vmatpush2.msra.mxu0 0.0
    %207 = vmatprep.subr.mxu0 0.0
    %208 = vmatpush2.msra.mxu0 0.0
    %209 = vmatprep.subr.mxu0 0.0
    %210 = vmatpush2.msra.mxu0 0.0
    %211 = vmatprep.subr.mxu0 0.0
    %212 = vmatpush2.msra.mxu0 0.0
    %213 = vmatprep.subr.mxu0 0.0
    %214 = vmatpush2.msra.mxu0 0.0
    %215 = vmatprep.subr.mxu0 0.0
    %216 = vmatpush2.msra.mxu0 0.0
    %217 = vmatprep.subr.mxu0 0.0
    %218 = vmatpush2.msra.mxu0 0.0
    %219 = vmatprep.subr.mxu0 0.0
    %220 = vmatpush2.msra.mxu0 0.0
    %221 = vmatprep.subr.mxu0 0.0
    %222 = vmatpush2.msra.mxu0 0.0
    %223 = vmatprep.subr.mxu0 0.0
    %224 = vmatpush2.msra.mxu0 0.0
    %225 = vmatprep.subr.mxu0 0.0
    %226 = vmatpush2.msra.mxu0 0.0
    %227 = vmatprep.mubr.f32.mxu0 0.0
    %228 = vmatmul.mubr.f32.gmra.mxu0 %v31
    %v229 = vpop.f32.mrf.mxu0
    %v230 = vadd.f32 %v155, %v229
    %v231 = vpop.f32.mrf.mxu0
    %232 = vmatprep.mubr.f32.mxu0 0.0
    %233 = vmatmul.mubr.f32.gmra.mxu0 %v32
    %v234 = vpop.f32.mrf.mxu0
    %v235 = vadd.f32 %v160, %v234
    %v236 = vpop.f32.mrf.mxu0
    %237 = vdwg.mxu0
    %s238 = scalar_lea.vmem %s1, 256
    %v239 = vld [vmem:[%s238] sm:$0xff]
    %v240 = vld [vmem:[%s238 + $0x8] sm:$0xff]
    %v241 = vld [vmem:[%s238 + $0x10] sm:$0xff]
    %v242 = vld [vmem:[%s238 + $0x18] sm:$0xff]
    %v243 = vld [vmem:[%s238 + $0x20] sm:$0xff]
    %v244 = vld [vmem:[%s238 + $0x28] sm:$0xff]
    %v245 = vld [vmem:[%s238 + $0x30] sm:$0xff]
    %v246 = vld [vmem:[%s238 + $0x38] sm:$0xff]
    %v247 = vld [vmem:[%s238 + $0x40] sm:$0xff]
    %v248 = vld [vmem:[%s238 + $0x48] sm:$0xff]
    %v249 = vld [vmem:[%s238 + $0x50] sm:$0xff]
    %v250 = vld [vmem:[%s238 + $0x58] sm:$0xff]
    %v251 = vld [vmem:[%s238 + $0x60] sm:$0xff]
    %v252 = vld [vmem:[%s238 + $0x68] sm:$0xff]
    %v253 = vld [vmem:[%s238 + $0x70] sm:$0xff]
    %v254 = vld [vmem:[%s238 + $0x78] sm:$0xff]
    %255 = vmatprep.subr.mxu0 0.0
    %256 = vmatpush1.msra.mxu0 %v254
    %257 = vmatprep.subr.mxu0 0.0
    %258 = vmatpush1.msra.mxu0 %v253
    %259 = vmatprep.subr.mxu0 0.0
    %260 = vmatpush1.msra.mxu0 %v252
    %261 = vmatprep.subr.mxu0 0.0
    %262 = vmatpush1.msra.mxu0 %v251
    %263 = vmatprep.subr.mxu0 0.0
    %264 = vmatpush1.msra.mxu0 %v250
    %265 = vmatprep.subr.mxu0 0.0
    %266 = vmatpush1.msra.mxu0 %v249
    %267 = vmatprep.subr.mxu0 0.0
    %268 = vmatpush1.msra.mxu0 %v248
    %269 = vmatprep.subr.mxu0 0.0
    %270 = vmatpush1.msra.mxu0 %v247
    %271 = vmatprep.subr.mxu0 0.0
    %272 = vmatpush1.msra.mxu0 %v246
    %273 = vmatprep.subr.mxu0 0.0
    %274 = vmatpush1.msra.mxu0 %v245
    %275 = vmatprep.subr.mxu0 0.0
    %276 = vmatpush1.msra.mxu0 %v244
    %277 = vmatprep.subr.mxu0 0.0
    %278 = vmatpush1.msra.mxu0 %v243
    %279 = vmatprep.subr.mxu0 0.0
    %280 = vmatpush1.msra.mxu0 %v242
    %281 = vmatprep.subr.mxu0 0.0
    %282 = vmatpush1.msra.mxu0 %v241
    %283 = vmatprep.subr.mxu0 0.0
    %284 = vmatpush1.msra.mxu0 %v240
    %285 = vmatprep.subr.mxu0 0.0
    %286 = vmatpush1.msra.mxu0 %v239
    %287 = vmatprep.subr.mxu0 0.0
    %288 = vmatpush2.msra.mxu0 0.0
    %289 = vmatprep.subr.mxu0 0.0
    %290 = vmatpush2.msra.mxu0 0.0
    %291 = vmatprep.subr.mxu0 0.0
    %292 = vmatpush2.msra.mxu0 0.0
    %293 = vmatprep.subr.mxu0 0.0
    %294 = vmatpush2.msra.mxu0 0.0
    %295 = vmatprep.subr.mxu0 0.0
    %296 = vmatpush2.msra.mxu0 0.0
    %297 = vmatprep.subr.mxu0 0.0
    %298 = vmatpush2.msra.mxu0 0.0
    %299 = vmatprep.subr.mxu0 0.0
    %300 = vmatpush2.msra.mxu0 0.0
    %301 = vmatprep.subr.mxu0 0.0
    %302 = vmatpush2.msra.mxu0 0.0
    %303 = vmatprep.subr.mxu0 0.0
    %304 = vmatpush2.msra.mxu0 0.0
    %305 = vmatprep.subr.mxu0 0.0
    %306 = vmatpush2.msra.mxu0 0.0
    %307 = vmatprep.subr.mxu0 0.0
    %308 = vmatpush2.msra.mxu0 0.0
    %309 = vmatprep.subr.mxu0 0.0
    %310 = vmatpush2.msra.mxu0 0.0
    %311 = vmatprep.subr.mxu0 0.0
    %312 = vmatpush2.msra.mxu0 0.0
    %313 = vmatprep.subr.mxu0 0.0
    %314 = vmatpush2.msra.mxu0 0.0
    %315 = vmatprep.subr.mxu0 0.0
    %316 = vmatpush2.msra.mxu0 0.0
    %317 = vmatprep.subr.mxu0 0.0
    %318 = vmatpush2.msra.mxu0 0.0
    %319 = vmatprep.mubr.f32.mxu0 0.0
    %320 = vmatmul.mubr.f32.gmra.mxu0 %v38
    %v321 = vpop.f32.mrf.mxu0
    %v322 = vadd.f32 0.0, %v321
    %v323 = vpop.f32.mrf.mxu0
    %324 = vmatprep.mubr.f32.mxu0 0.0
    %325 = vmatmul.mubr.f32.gmra.mxu0 %v39
    %v326 = vpop.f32.mrf.mxu0
    %v327 = vadd.f32 0.0, %v326
    %v328 = vpop.f32.mrf.mxu0
    %329 = vdwg.mxu0
    %v330 = vadd.f32 %v230, %v322
    %v331 = vadd.f32 %v235, %v327
    %vm332 = vcmp.gt.f32.partialorder %v330, 0.0
    %vm333 = vcmp.gt.f32.partialorder %v331, 0.0
    %v334 = vmul.f32 %v330, 0.01
    %v335 = vmul.f32 %v331, 0.01
    %v336 = vsel %vm332, %v330, %v334
    %v337 = vsel %vm333, %v331, %v335
    %v340 = vrot.slane %v336, 7
    %v341 = vrot.slane %v337, 7
    %v344 = vsel %vm30, 0.0, %v340
    %v345 = vsel %vm30, 0.0, %v341
    %v346 = vrot.slane %v336, 1
    %v347 = vrot.slane %v337, 1
    %v350 = vsel %vm37, %v346, 0.0
    %v351 = vsel %vm37, %v347, 0.0
    %v352 = vld [vmem:[%s2] sm:$0xff]
    %v353 = vld [vmem:[%s2 + $0x8] sm:$0xff]
    %v354 = vld [vmem:[%s2 + $0x10] sm:$0xff]
    %v355 = vld [vmem:[%s2 + $0x18] sm:$0xff]
    %v356 = vld [vmem:[%s2 + $0x20] sm:$0xff]
    %v357 = vld [vmem:[%s2 + $0x28] sm:$0xff]
    %v358 = vld [vmem:[%s2 + $0x30] sm:$0xff]
    %v359 = vld [vmem:[%s2 + $0x38] sm:$0xff]
    %v360 = vld [vmem:[%s2 + $0x40] sm:$0xff]
    %v361 = vld [vmem:[%s2 + $0x48] sm:$0xff]
    %v362 = vld [vmem:[%s2 + $0x50] sm:$0xff]
    %v363 = vld [vmem:[%s2 + $0x58] sm:$0xff]
    %v364 = vld [vmem:[%s2 + $0x60] sm:$0xff]
    %v365 = vld [vmem:[%s2 + $0x68] sm:$0xff]
    %v366 = vld [vmem:[%s2 + $0x70] sm:$0xff]
    %v367 = vld [vmem:[%s2 + $0x78] sm:$0xff]
    %s368 = scalar_lea.vmem %s2, 128
    %v369 = vld [vmem:[%s368] sm:$0xff]
    %v370 = vld [vmem:[%s368 + $0x8] sm:$0xff]
    %v371 = vld [vmem:[%s368 + $0x10] sm:$0xff]
    %v372 = vld [vmem:[%s368 + $0x18] sm:$0xff]
    %v373 = vld [vmem:[%s368 + $0x20] sm:$0xff]
    %v374 = vld [vmem:[%s368 + $0x28] sm:$0xff]
    %v375 = vld [vmem:[%s368 + $0x30] sm:$0xff]
    %v376 = vld [vmem:[%s368 + $0x38] sm:$0xff]
    %v377 = vld [vmem:[%s368 + $0x40] sm:$0xff]
    %v378 = vld [vmem:[%s368 + $0x48] sm:$0xff]
    %v379 = vld [vmem:[%s368 + $0x50] sm:$0xff]
    %v380 = vld [vmem:[%s368 + $0x58] sm:$0xff]
    %v381 = vld [vmem:[%s368 + $0x60] sm:$0xff]
    %v382 = vld [vmem:[%s368 + $0x68] sm:$0xff]
    %v383 = vld [vmem:[%s368 + $0x70] sm:$0xff]
    %v384 = vld [vmem:[%s368 + $0x78] sm:$0xff]
    %vm385 = vcmask 523264
    %v386 = vsel %vm385, %v336, 0
    %v388 = vsel %vm385, %v337, 0
    %390 = vmatprep.subr.mxu0 0.0
    %391 = vmatpush1.msra.mxu0 0.0
    %392 = vmatprep.subr.mxu0 0.0
    %393 = vmatpush1.msra.mxu0 0.0
    %394 = vmatprep.subr.mxu0 0.0
    %395 = vmatpush1.msra.mxu0 0.0
    %396 = vmatprep.subr.mxu0 0.0
    %397 = vmatpush1.msra.mxu0 0.0
    %398 = vmatprep.subr.mxu0 0.0
    %399 = vmatpush1.msra.mxu0 0.0
    %400 = vmatprep.subr.mxu0 0.0
    %401 = vmatpush1.msra.mxu0 0.0
    %402 = vmatprep.subr.mxu0 0.0
    %403 = vmatpush1.msra.mxu0 0.0
    %404 = vmatprep.subr.mxu0 0.0
    %405 = vmatpush1.msra.mxu0 0.0
    %406 = vmatprep.subr.mxu0 %v384
    %407 = vmatpush1.msra.mxu0 %v383
    %408 = vmatprep.subr.mxu0 %v382
    %409 = vmatpush1.msra.mxu0 %v381
    %410 = vmatprep.subr.mxu0 %v380
    %411 = vmatpush1.msra.mxu0 %v379
    %412 = vmatprep.subr.mxu0 %v378
    %413 = vmatpush1.msra.mxu0 %v377
    %414 = vmatprep.subr.mxu0 %v376
    %415 = vmatpush1.msra.mxu0 %v375
    %416 = vmatprep.subr.mxu0 %v374
    %417 = vmatpush1.msra.mxu0 %v373
    %418 = vmatprep.subr.mxu0 %v372
    %419 = vmatpush1.msra.mxu0 %v371
    %420 = vmatprep.subr.mxu0 %v370
    %421 = vmatpush1.msra.mxu0 %v369
    %422 = vmatprep.subr.mxu0 0.0
    %423 = vmatpush2.msra.mxu0 0.0
    %424 = vmatprep.subr.mxu0 0.0
    %425 = vmatpush2.msra.mxu0 0.0
    %426 = vmatprep.subr.mxu0 0.0
    %427 = vmatpush2.msra.mxu0 0.0
    %428 = vmatprep.subr.mxu0 0.0
    %429 = vmatpush2.msra.mxu0 0.0
    %430 = vmatprep.subr.mxu0 0.0
    %431 = vmatpush2.msra.mxu0 0.0
    %432 = vmatprep.subr.mxu0 0.0
    %433 = vmatpush2.msra.mxu0 0.0
    %434 = vmatprep.subr.mxu0 0.0
    %435 = vmatpush2.msra.mxu0 0.0
    %436 = vmatprep.subr.mxu0 0.0
    %437 = vmatpush2.msra.mxu0 0.0
    %438 = vmatprep.subr.mxu0 0.0
    %439 = vmatpush2.msra.mxu0 0.0
    %440 = vmatprep.subr.mxu0 0.0
    %441 = vmatpush2.msra.mxu0 0.0
    %442 = vmatprep.subr.mxu0 0.0
    %443 = vmatpush2.msra.mxu0 0.0
    %444 = vmatprep.subr.mxu0 0.0
    %445 = vmatpush2.msra.mxu0 0.0
    %446 = vmatprep.subr.mxu0 0.0
    %447 = vmatpush2.msra.mxu0 0.0
    %448 = vmatprep.subr.mxu0 0.0
    %449 = vmatpush2.msra.mxu0 0.0
    %450 = vmatprep.subr.mxu0 0.0
    %451 = vmatpush2.msra.mxu0 0.0
    %452 = vmatprep.subr.mxu0 0.0
    %453 = vmatpush2.msra.mxu0 0.0
    %454 = vmatprep.mubr.f32.mxu0 0.0
    %455 = vmatmul.mubr.f32.gmra.mxu0 %v386
    %v456 = vpop.f32.mrf.mxu0
    %v457 = vadd.f32 0.0, %v456
    %v458 = vpop.f32.mrf.mxu0
    %v459 = vadd.f32 0.0, %v458
    %460 = vmatprep.mubr.f32.mxu0 0.0
    %461 = vmatmul.mubr.f32.gmra.mxu0 %v388
    %v462 = vpop.f32.mrf.mxu0
    %v463 = vadd.f32 0.0, %v462
    %v464 = vpop.f32.mrf.mxu0
    %v465 = vadd.f32 0.0, %v464
    %466 = vdwg.mxu0
    %v468 = vsel %vm385, %v344, 0
    %v471 = vsel %vm385, %v345, 0
    %473 = vmatprep.subr.mxu0 0.0
    %474 = vmatpush1.msra.mxu0 0.0
    %475 = vmatprep.subr.mxu0 0.0
    %476 = vmatpush1.msra.mxu0 0.0
    %477 = vmatprep.subr.mxu0 0.0
    %478 = vmatpush1.msra.mxu0 0.0
    %479 = vmatprep.subr.mxu0 0.0
    %480 = vmatpush1.msra.mxu0 0.0
    %481 = vmatprep.subr.mxu0 0.0
    %482 = vmatpush1.msra.mxu0 0.0
    %483 = vmatprep.subr.mxu0 0.0
    %484 = vmatpush1.msra.mxu0 0.0
    %485 = vmatprep.subr.mxu0 0.0
    %486 = vmatpush1.msra.mxu0 0.0
    %487 = vmatprep.subr.mxu0 0.0
    %488 = vmatpush1.msra.mxu0 0.0
    %489 = vmatprep.subr.mxu0 %v367
    %490 = vmatpush1.msra.mxu0 %v366
    %491 = vmatprep.subr.mxu0 %v365
    %492 = vmatpush1.msra.mxu0 %v364
    %493 = vmatprep.subr.mxu0 %v363
    %494 = vmatpush1.msra.mxu0 %v362
    %495 = vmatprep.subr.mxu0 %v361
    %496 = vmatpush1.msra.mxu0 %v360
    %497 = vmatprep.subr.mxu0 %v359
    %498 = vmatpush1.msra.mxu0 %v358
    %499 = vmatprep.subr.mxu0 %v357
    %500 = vmatpush1.msra.mxu0 %v356
    %501 = vmatprep.subr.mxu0 %v355
    %502 = vmatpush1.msra.mxu0 %v354
    %503 = vmatprep.subr.mxu0 %v353
    %504 = vmatpush1.msra.mxu0 %v352
    %505 = vmatprep.subr.mxu0 0.0
    %506 = vmatpush2.msra.mxu0 0.0
    %507 = vmatprep.subr.mxu0 0.0
    %508 = vmatpush2.msra.mxu0 0.0
    %509 = vmatprep.subr.mxu0 0.0
    %510 = vmatpush2.msra.mxu0 0.0
    %511 = vmatprep.subr.mxu0 0.0
    %512 = vmatpush2.msra.mxu0 0.0
    %513 = vmatprep.subr.mxu0 0.0
    %514 = vmatpush2.msra.mxu0 0.0
    %515 = vmatprep.subr.mxu0 0.0
    %516 = vmatpush2.msra.mxu0 0.0
    %517 = vmatprep.subr.mxu0 0.0
    %518 = vmatpush2.msra.mxu0 0.0
    %519 = vmatprep.subr.mxu0 0.0
    %520 = vmatpush2.msra.mxu0 0.0
    %521 = vmatprep.subr.mxu0 0.0
    %522 = vmatpush2.msra.mxu0 0.0
    %523 = vmatprep.subr.mxu0 0.0
    %524 = vmatpush2.msra.mxu0 0.0
    %525 = vmatprep.subr.mxu0 0.0
    %526 = vmatpush2.msra.mxu0 0.0
    %527 = vmatprep.subr.mxu0 0.0
    %528 = vmatpush2.msra.mxu0 0.0
    %529 = vmatprep.subr.mxu0 0.0
    %530 = vmatpush2.msra.mxu0 0.0
    %531 = vmatprep.subr.mxu0 0.0
    %532 = vmatpush2.msra.mxu0 0.0
    %533 = vmatprep.subr.mxu0 0.0
    %534 = vmatpush2.msra.mxu0 0.0
    %535 = vmatprep.subr.mxu0 0.0
    %536 = vmatpush2.msra.mxu0 0.0
    %537 = vmatprep.mubr.f32.mxu0 0.0
    %538 = vmatmul.mubr.f32.gmra.mxu0 %v468
    %v539 = vpop.f32.mrf.mxu0
    %v540 = vadd.f32 %v457, %v539
    %v541 = vpop.f32.mrf.mxu0
    %v542 = vadd.f32 %v459, %v541
    %543 = vmatprep.mubr.f32.mxu0 0.0
    %544 = vmatmul.mubr.f32.gmra.mxu0 %v471
    %v545 = vpop.f32.mrf.mxu0
    %v546 = vadd.f32 %v463, %v545
    %v547 = vpop.f32.mrf.mxu0
    %v548 = vadd.f32 %v465, %v547
    %549 = vdwg.mxu0
    %s550 = scalar_lea.vmem %s2, 256
    %v551 = vld [vmem:[%s550] sm:$0xff]
    %v552 = vld [vmem:[%s550 + $0x8] sm:$0xff]
    %v553 = vld [vmem:[%s550 + $0x10] sm:$0xff]
    %v554 = vld [vmem:[%s550 + $0x18] sm:$0xff]
    %v555 = vld [vmem:[%s550 + $0x20] sm:$0xff]
    %v556 = vld [vmem:[%s550 + $0x28] sm:$0xff]
    %v557 = vld [vmem:[%s550 + $0x30] sm:$0xff]
    %v558 = vld [vmem:[%s550 + $0x38] sm:$0xff]
    %v559 = vld [vmem:[%s550 + $0x40] sm:$0xff]
    %v560 = vld [vmem:[%s550 + $0x48] sm:$0xff]
    %v561 = vld [vmem:[%s550 + $0x50] sm:$0xff]
    %v562 = vld [vmem:[%s550 + $0x58] sm:$0xff]
    %v563 = vld [vmem:[%s550 + $0x60] sm:$0xff]
    %v564 = vld [vmem:[%s550 + $0x68] sm:$0xff]
    %v565 = vld [vmem:[%s550 + $0x70] sm:$0xff]
    %v566 = vld [vmem:[%s550 + $0x78] sm:$0xff]
    %v568 = vsel %vm385, %v350, 0
    %v571 = vsel %vm385, %v351, 0
    %573 = vmatprep.subr.mxu0 0.0
    %574 = vmatpush1.msra.mxu0 0.0
    %575 = vmatprep.subr.mxu0 0.0
    %576 = vmatpush1.msra.mxu0 0.0
    %577 = vmatprep.subr.mxu0 0.0
    %578 = vmatpush1.msra.mxu0 0.0
    %579 = vmatprep.subr.mxu0 0.0
    %580 = vmatpush1.msra.mxu0 0.0
    %581 = vmatprep.subr.mxu0 0.0
    %582 = vmatpush1.msra.mxu0 0.0
    %583 = vmatprep.subr.mxu0 0.0
    %584 = vmatpush1.msra.mxu0 0.0
    %585 = vmatprep.subr.mxu0 0.0
    %586 = vmatpush1.msra.mxu0 0.0
    %587 = vmatprep.subr.mxu0 0.0
    %588 = vmatpush1.msra.mxu0 0.0
    %589 = vmatprep.subr.mxu0 %v566
    %590 = vmatpush1.msra.mxu0 %v565
    %591 = vmatprep.subr.mxu0 %v564
    %592 = vmatpush1.msra.mxu0 %v563
    %593 = vmatprep.subr.mxu0 %v562
    %594 = vmatpush1.msra.mxu0 %v561
    %595 = vmatprep.subr.mxu0 %v560
    %596 = vmatpush1.msra.mxu0 %v559
    %597 = vmatprep.subr.mxu0 %v558
    %598 = vmatpush1.msra.mxu0 %v557
    %599 = vmatprep.subr.mxu0 %v556
    %600 = vmatpush1.msra.mxu0 %v555
    %601 = vmatprep.subr.mxu0 %v554
    %602 = vmatpush1.msra.mxu0 %v553
    %603 = vmatprep.subr.mxu0 %v552
    %604 = vmatpush1.msra.mxu0 %v551
    %605 = vmatprep.subr.mxu0 0.0
    %606 = vmatpush2.msra.mxu0 0.0
    %607 = vmatprep.subr.mxu0 0.0
    %608 = vmatpush2.msra.mxu0 0.0
    %609 = vmatprep.subr.mxu0 0.0
    %610 = vmatpush2.msra.mxu0 0.0
    %611 = vmatprep.subr.mxu0 0.0
    %612 = vmatpush2.msra.mxu0 0.0
    %613 = vmatprep.subr.mxu0 0.0
    %614 = vmatpush2.msra.mxu0 0.0
    %615 = vmatprep.subr.mxu0 0.0
    %616 = vmatpush2.msra.mxu0 0.0
    %617 = vmatprep.subr.mxu0 0.0
    %618 = vmatpush2.msra.mxu0 0.0
    %619 = vmatprep.subr.mxu0 0.0
    %620 = vmatpush2.msra.mxu0 0.0
    %621 = vmatprep.subr.mxu0 0.0
    %622 = vmatpush2.msra.mxu0 0.0
    %623 = vmatprep.subr.mxu0 0.0
    %624 = vmatpush2.msra.mxu0 0.0
    %625 = vmatprep.subr.mxu0 0.0
    %626 = vmatpush2.msra.mxu0 0.0
    %627 = vmatprep.subr.mxu0 0.0
    %628 = vmatpush2.msra.mxu0 0.0
    %629 = vmatprep.subr.mxu0 0.0
    %630 = vmatpush2.msra.mxu0 0.0
    %631 = vmatprep.subr.mxu0 0.0
    %632 = vmatpush2.msra.mxu0 0.0
    %633 = vmatprep.subr.mxu0 0.0
    %634 = vmatpush2.msra.mxu0 0.0
    %635 = vmatprep.subr.mxu0 0.0
    %636 = vmatpush2.msra.mxu0 0.0
    %637 = vmatprep.mubr.f32.mxu0 0.0
    %638 = vmatmul.mubr.f32.gmra.mxu0 %v568
    %v639 = vpop.f32.mrf.mxu0
    %v640 = vadd.f32 0.0, %v639
    %v641 = vpop.f32.mrf.mxu0
    %v642 = vadd.f32 0.0, %v641
    %643 = vmatprep.mubr.f32.mxu0 0.0
    %644 = vmatmul.mubr.f32.gmra.mxu0 %v571
    %v645 = vpop.f32.mrf.mxu0
    %v646 = vadd.f32 0.0, %v645
    %v647 = vpop.f32.mrf.mxu0
    %v648 = vadd.f32 0.0, %v647
    %649 = vdwg.mxu0
    %v650 = vadd.f32 %v540, %v640
    %v651 = vadd.f32 %v542, %v642
    %v652 = vadd.f32 %v546, %v646
    %v653 = vadd.f32 %v548, %v648
    %v654 = vxor.u32 %v650, 2147483648
    %v655 = vxor.u32 %v651, 2147483648
    %v656 = vxor.u32 %v652, 2147483648
    %v657 = vxor.u32 %v653, 2147483648
    %v658 = vmul.f32 %v654, 1.442695
    %v659 = vpow.pop %v658
    %v660 = vmul.f32 %v655, 1.442695
    %v661 = vpow.pop %v660
    %v662 = vmul.f32 %v656, 1.442695
    %v663 = vpow.pop %v662
    %v664 = vmul.f32 %v657, 1.442695
    %v665 = vpow.pop %v664
    %v666 = vadd.f32 %v659, 1.0
    %v667 = vadd.f32 %v661, 1.0
    %v668 = vadd.f32 %v663, 1.0
    %v669 = vadd.f32 %v665, 1.0
    %v670 = vrcp.pop %v666
    %v671 = vmul.f32 1.0, %v670
    %v672 = vrcp.pop %v667
    %v673 = vmul.f32 1.0, %v672
    %v674 = vrcp.pop %v668
    %v675 = vmul.f32 1.0, %v674
    %v676 = vrcp.pop %v669
    %v677 = vmul.f32 1.0, %v676
    %v678 = vadd.f32 %v31, %v15
    %v679 = vadd.f32 %v32, %v16
    %v680 = vadd.f32 %v678, %v38
    %v681 = vadd.f32 %v679, %v39
    %v682 = vmul.f32 %v680, 0.33333334
    %v683 = vmul.f32 %v681, 0.33333334
    %v684 = vmax.f32 %v49, %v15
    %v685 = vmax.f32 %v50, %v16
    %v686 = vmax.f32 %v684, %v51
    %v687 = vmax.f32 %v685, %v52
    %v688 = vadd.f32 %v24, %v31
    %v689 = vadd.f32 %v25, %v32
    %v690 = vadd.f32 %v688, %v15
    %v691 = vadd.f32 %v689, %v16
    %v692 = vadd.f32 %v690, %v38
    %v693 = vadd.f32 %v691, %v39
    %v694 = vadd.f32 %v692, %v45
    %v695 = vadd.f32 %v693, %v46
    %v696 = vmul.f32 %v694, 0.2
    %v697 = vmul.f32 %v695, 0.2
    %v698 = vmax.f32 %v47, %v49
    %v699 = vmax.f32 %v48, %v50
    %v700 = vmax.f32 %v15, %v51
    %v701 = vmax.f32 %v16, %v52
    %v702 = vmax.f32 %v698, %v700
    %v703 = vmax.f32 %v699, %v701
    %v704 = vmax.f32 %v702, %v53
    %v705 = vmax.f32 %v703, %v54
    %v706 = vadd.f32 %v682, %v686
    %v707 = vadd.f32 %v683, %v687
    %v708 = vmul.f32 %v706, %v671
    %v709 = vmul.f32 %v707, %v675
    %v710 = vadd.f32 %v696, %v704
    %v711 = vadd.f32 %v697, %v705
    %v712 = vmul.f32 %v710, %v673
    %v713 = vmul.f32 %v711, %v677
    %v714 = vadd.f32 %v708, %v712
    %v715 = vadd.f32 %v709, %v713
    %v716 = vrot.slane %v714, 4
    %v717 = vmax.f32 %v714, %v716
    %v718 = vrot.slane %v717, 2
    %v719 = vmax.f32 %v717, %v718
    %v720 = vrot.slane %v719, 1
    %v721 = vmax.f32 %v719, %v720
    %v722 = vrot.slane %v715, 4
    %v723 = vmax.f32 %v715, %v722
    %v724 = vrot.slane %v723, 2
    %v725 = vmax.f32 %v723, %v724
    %v726 = vrot.slane %v725, 1
    %v727 = vmax.f32 %v725, %v726
    %vm730 = vcmask 1041409
    %v731 = vsel %vm730, %v727, %v721
    %733 = vst [vmem:[#allocation2] sm:$0x3] %v731
    // Predicated region
    $region14: #{tpu_custom_call.1} parent=1 // pred_check
      _
    $region15: #{tpu_custom_call.1} parent=1 // pred_check_branch
      %735 = sbr.rel (0) target = $region17
    $region16: #{tpu_custom_call.1} parent=1 // pred_region
      %s737 = ssub.s32 32, 32
      %738 = vsyncadd [#allocation3], %s737
      %s740 = sshll.u32 [#allocation2], 4
      %s741 = int_to_ptr.vmem [resolvable:$true] %s740
      %743 = dma.vmem_to_hbm [thread:$0]  %s741, 32, %s3, [#allocation3]
    $region17: #{tpu_custom_call.1} parent=1 // pred_fallthru
      _
    // Predicated region
    $region18: #{tpu_custom_call.1} parent=1 // pred_check
      _
    $region19: #{tpu_custom_call.1} parent=1 // pred_check_branch
      %745 = sbr.rel (0) target = $region21
    $region20: #{tpu_custom_call.1} parent=1 // pred_region
      %746 = dma.done [#allocation3], 32
    $region21: #{tpu_custom_call.1} parent=1 // pred_fallthru
      _
    %747 = vsyncpa [#allocation3], 1

</llo_original>
